<compile_context>
chip_gen: v7x
topology: tpu7x:2x2x1
jax: 0.10.0
libtpu: 0.0.40
codegen_flags: <defaults>
</compile_context>

<pallas_src>
import functools

import jax
import jax.numpy as jnp
from jax import lax
from jax.experimental import pallas as pl
from jax.experimental.pallas import tpu as pltpu


def _headcnn_fused_kernel(x_ref, w_ref, b_ref, o_ref, *, H, W, num_layers, Hf, Wf):
    """Fused [ReLU -> 3x3 valid conv] * num_layers -> compacted flatten, one image.

    x_ref: (C, H*W)        channel-major flattened image
    w_ref: (L, Co, 9*C)    per-layer weights, k index = (di*3 + dj)*C + ci
    b_ref: (L, Co, 1)      per-layer bias
    o_ref: (Co, Hf*Wf)     flattened valid output (channel-major)
    """
    C = x_ref.shape[0]
    n = H * W
    a = x_ref[...].astype(jnp.float32)                        # (C, H*W)

    for l in range(num_layers):
        a = jnp.maximum(a, 0.0)                                # ReLU once per layer
        # Build im2col patches: 9 lane-rotated copies stacked along sublanes.
        # Rotation wraps garbage into the invalid tail columns only; those
        # columns never contribute to any valid output position, so this is
        # exact for the (Hf, Wf) region we ultimately read out.
        taps = []
        for di in range(3):
            for dj in range(3):
                s = di * W + dj
                if s == 0:
                    taps.append(a)
                else:
                    taps.append(pltpu.roll(a, shift=(n - s) % n, axis=1))
        patches = jnp.concatenate(taps, axis=0)                # (9*C, H*W)
        # One MXU matmul per layer: K = 9*C, N = H*W (lane dense), + bias.
        a = jnp.dot(w_ref[l], patches,
                    preferred_element_type=jnp.float32) + b_ref[l]   # (Co, H*W)

    # Compact the valid (Hf, Wf) corner of the fixed-width layout into a single
    # lane-dense (Co, Hf*Wf) slab and store it once.
    rows = [a[:, i * W: i * W + Wf] for i in range(Hf)]
    o_ref[...] = jnp.concatenate(rows, axis=1).astype(o_ref.dtype)


def head_cnn_forward(x_nchw, weights_oihw, biases):
    """HeadCNN.forward: [ReLU, Conv2d(3x3, valid)] * num_layers, then Flatten.

    x_nchw:       (B, C, H, W) PyTorch-style input
    weights_oihw: list of (Co, C, 3, 3) conv weights (PyTorch OIHW layout)
    biases:       list of (Co,) conv biases
    """
    B, C, H, W = x_nchw.shape
    L = len(weights_oihw)
    if L == 0:                                   # num_layers == 0 -> just flatten
        return x_nchw.reshape(B, -1)
    Hf, Wf = H - 2 * L, W - 2 * L
    if Hf <= 0 or Wf <= 0:
        raise ValueError("num_layers too large for the spatial input size")
    Co = weights_oihw[0].shape[0]

    # Repack weights once on the host side: (L, Co, 9*C), k = (di*3+dj)*C + ci.
    w_mat = jnp.stack([jnp.transpose(w, (0, 2, 3, 1)).reshape(Co, 9 * C)
                       for w in weights_oihw])
    b_mat = jnp.stack([b.reshape(Co, 1) for b in biases])
    x2 = x_nchw.reshape(B, C, H * W)             # contiguous reshape, no transpose

    kernel = functools.partial(_headcnn_fused_kernel, H=H, W=W,
                               num_layers=L, Hf=Hf, Wf=Wf)
    out = pl.pallas_call(
        kernel,
        out_shape=jax.ShapeDtypeStruct((B, Co, Hf * Wf), x_nchw.dtype),
        grid_spec=pltpu.PrefetchScalarGridSpec(
            num_scalar_prefetch=0,
            grid=(B,),
            in_specs=[
                pl.BlockSpec((None, C, H * W), lambda b: (b, 0, 0)),
                pl.BlockSpec((L, Co, 9 * C), lambda b: (0, 0, 0)),
                pl.BlockSpec((L, Co, 1), lambda b: (0, 0, 0)),
            ],
            out_specs=pl.BlockSpec((None, Co, Hf * Wf), lambda b: (b, 0, 0)),
        ),
        compiler_params=pltpu.CompilerParams(
            dimension_semantics=("parallel",)),       # 2 TCs on v7x split the batch
    )(x2, w_mat, b_mat)

    # (B, Co, Hf*Wf) is already channel-major; this reshape is layout-free and
    # matches torch's x.view(B, -1) on the NCHW conv output.
    return out.reshape(B, -1)


def init_headcnn_params(key, num_layers, num_filters):
    """Deterministic re-implementation of weight_init for the conv stack (OIHW)."""
    gain = jnp.sqrt(2.0)                          # nn.init.calculate_gain('relu')
    weights, biases = [], []
    for _ in range(num_layers):
        key, sub = jax.random.split(key)
        a = jax.random.normal(sub, (num_filters, num_filters), jnp.float32)
        q, r = jnp.linalg.qr(a)
        q = q * jnp.sign(jnp.diag(r))[None, :]    # deterministic orthogonal
        w = jnp.zeros((num_filters, num_filters, 3, 3), jnp.float32)
        w = w.at[:, :, 1, 1].set(gain * q)        # only center tap non-zero
        weights.append(w)
        biases.append(jnp.zeros((num_filters,), jnp.float32))
    return weights, biases


if __name__ == "__main__":
    key = jax.random.PRNGKey(0)
    B, C, H, W = 2, 32, 16, 16                    # in_shape = (32, 16, 16), batch = 2
    num_layers = 2
    k_x, k_p = jax.random.split(key)
    x = jax.random.normal(k_x, (B, C, H, W), jnp.float32)       # NCHW like PyTorch
    weights, biases = init_headcnn_params(k_p, num_layers, C)

    out = jax.block_until_ready(head_cnn_forward(x, weights, biases))

    # plain-JAX reference of the PyTorch forward (ReLU -> valid conv) * L -> flatten
    ref = x
    for w, b in zip(weights, biases):
        ref = jax.nn.relu(ref)
        ref = lax.conv_general_dilated(
            ref, w, window_strides=(1, 1), padding="VALID",
            dimension_numbers=("NCHW", "OIHW", "NCHW"),
            precision=lax.Precision.HIGHEST) + b[None, :, None, None]
    ref = ref.reshape(B, -1)

    assert out.shape == (B, C * (H - 2 * num_layers) * (W - 2 * num_layers)), out.shape
    max_err = float(jnp.max(jnp.abs(out - ref)))
    assert jnp.allclose(out, ref, atol=1e-3, rtol=1e-3), max_err
    print("KERNEL_OK")
</pallas_src>

<mosaic_0001>
module attributes {stable_mosaic.version = 11 : i64} {
  func.func @_headcnn_fused_kernel(%arg0: i32, %arg1: memref<1x32x256xf32, #tpu.memory_space<vmem>>, %arg2: memref<2x32x288xf32, #tpu.memory_space<vmem>>, %arg3: memref<2x32x1xf32, #tpu.memory_space<vmem>>, %arg4: memref<1x32x144xf32, #tpu.memory_space<vmem>>) attributes {dimension_semantics = [#tpu.dimension_semantics<parallel>], iteration_bounds = array<i64: 2>, scalar_prefetch = 0 : i64, scratch_operands = 0 : i64, tpu.core_type = #tpu.core_type<tc>, window_params = [{transform_indices = @transform_0, window_bounds = array<i64: 1, 32, 256>}, {pipeline_mode = #tpu.pipeline_mode<synchronous>, transform_indices = @transform_1, window_bounds = array<i64: 2, 32, 288>}, {pipeline_mode = #tpu.pipeline_mode<synchronous>, transform_indices = @transform_2, window_bounds = array<i64: 2, 32, 1>}, {transform_indices = @transform_3, window_bounds = array<i64: 1, 32, 144>}]} {
    %c0 = arith.constant 0 : index
    %c0_0 = arith.constant 0 : index
    %c0_1 = arith.constant 0 : index
    %0 = vector.load %arg1[%c0, %c0_0, %c0_1] : memref<1x32x256xf32, #tpu.memory_space<vmem>>, vector<1x32x256xf32>
    %1 = vector.shape_cast %0 : vector<1x32x256xf32> to vector<32x256xf32>
    %cst = arith.constant 0.000000e+00 : f32
    %2 = vector.broadcast %cst : f32 to vector<32x256xf32>
    %3 = arith.maximumf %1, %2 : vector<32x256xf32>
    %c255_i32 = arith.constant 255 : i32
    %4 = tpu.dynamic_rotate %3 by %c255_i32 dim 1 : vector<32x256xf32>, i32 -> vector<32x256xf32>
    %c254_i32 = arith.constant 254 : i32
    %5 = tpu.dynamic_rotate %3 by %c254_i32 dim 1 : vector<32x256xf32>, i32 -> vector<32x256xf32>
    %c240_i32 = arith.constant 240 : i32
    %6 = tpu.dynamic_rotate %3 by %c240_i32 dim 1 : vector<32x256xf32>, i32 -> vector<32x256xf32>
    %c239_i32 = arith.constant 239 : i32
    %7 = tpu.dynamic_rotate %3 by %c239_i32 dim 1 : vector<32x256xf32>, i32 -> vector<32x256xf32>
    %c238_i32 = arith.constant 238 : i32
    %8 = tpu.dynamic_rotate %3 by %c238_i32 dim 1 : vector<32x256xf32>, i32 -> vector<32x256xf32>
    %c224_i32 = arith.constant 224 : i32
    %9 = tpu.dynamic_rotate %3 by %c224_i32 dim 1 : vector<32x256xf32>, i32 -> vector<32x256xf32>
    %c223_i32 = arith.constant 223 : i32
    %10 = tpu.dynamic_rotate %3 by %c223_i32 dim 1 : vector<32x256xf32>, i32 -> vector<32x256xf32>
    %c222_i32 = arith.constant 222 : i32
    %11 = tpu.dynamic_rotate %3 by %c222_i32 dim 1 : vector<32x256xf32>, i32 -> vector<32x256xf32>
    %12 = tpu.concatenate %3, %4, %5, %6, %7, %8, %9, %10, %11 in 0 : vector<32x256xf32>, vector<32x256xf32>, vector<32x256xf32>, vector<32x256xf32>, vector<32x256xf32>, vector<32x256xf32>, vector<32x256xf32>, vector<32x256xf32>, vector<32x256xf32> -> vector<288x256xf32>
    %c0_2 = arith.constant 0 : index
    %c0_3 = arith.constant 0 : index
    %c0_4 = arith.constant 0 : index
    %13 = vector.load %arg2[%c0_2, %c0_3, %c0_4] : memref<2x32x288xf32, #tpu.memory_space<vmem>>, vector<1x32x288xf32>
    %14 = vector.shape_cast %13 : vector<1x32x288xf32> to vector<32x288xf32>
    %cst_5 = arith.constant dense<0.000000e+00> : vector<32x256xf32>
    %15 = tpu.matmul %14, %12, %cst_5 {dimension_numbers = #tpu.dot_dimension_numbers<[1], [0], [0], [1], [0, 0, 1, 1], [], []>} : vector<32x288xf32>, vector<288x256xf32>, vector<32x256xf32> -> vector<32x256xf32>
    %c0_6 = arith.constant 0 : index
    %c0_7 = arith.constant 0 : index
    %c0_8 = arith.constant 0 : index
    %16 = vector.load %arg3[%c0_6, %c0_7, %c0_8] : memref<2x32x1xf32, #tpu.memory_space<vmem>>, vector<1x32x1xf32>
    %17 = vector.shape_cast %16 : vector<1x32x1xf32> to vector<32x1xf32>
    %18 = vector.broadcast %17 : vector<32x1xf32> to vector<32x256xf32>
    %19 = arith.addf %15, %18 : vector<32x256xf32>
    %cst_9 = arith.constant 0.000000e+00 : f32
    %20 = vector.broadcast %cst_9 : f32 to vector<32x256xf32>
    %21 = arith.maximumf %19, %20 : vector<32x256xf32>
    %c255_i32_10 = arith.constant 255 : i32
    %22 = tpu.dynamic_rotate %21 by %c255_i32_10 dim 1 : vector<32x256xf32>, i32 -> vector<32x256xf32>
    %c254_i32_11 = arith.constant 254 : i32
    %23 = tpu.dynamic_rotate %21 by %c254_i32_11 dim 1 : vector<32x256xf32>, i32 -> vector<32x256xf32>
    %c240_i32_12 = arith.constant 240 : i32
    %24 = tpu.dynamic_rotate %21 by %c240_i32_12 dim 1 : vector<32x256xf32>, i32 -> vector<32x256xf32>
    %c239_i32_13 = arith.constant 239 : i32
    %25 = tpu.dynamic_rotate %21 by %c239_i32_13 dim 1 : vector<32x256xf32>, i32 -> vector<32x256xf32>
    %c238_i32_14 = arith.constant 238 : i32
    %26 = tpu.dynamic_rotate %21 by %c238_i32_14 dim 1 : vector<32x256xf32>, i32 -> vector<32x256xf32>
    %c224_i32_15 = arith.constant 224 : i32
    %27 = tpu.dynamic_rotate %21 by %c224_i32_15 dim 1 : vector<32x256xf32>, i32 -> vector<32x256xf32>
    %c223_i32_16 = arith.constant 223 : i32
    %28 = tpu.dynamic_rotate %21 by %c223_i32_16 dim 1 : vector<32x256xf32>, i32 -> vector<32x256xf32>
    %c222_i32_17 = arith.constant 222 : i32
    %29 = tpu.dynamic_rotate %21 by %c222_i32_17 dim 1 : vector<32x256xf32>, i32 -> vector<32x256xf32>
    %30 = tpu.concatenate %21, %22, %23, %24, %25, %26, %27, %28, %29 in 0 : vector<32x256xf32>, vector<32x256xf32>, vector<32x256xf32>, vector<32x256xf32>, vector<32x256xf32>, vector<32x256xf32>, vector<32x256xf32>, vector<32x256xf32>, vector<32x256xf32> -> vector<288x256xf32>
    %c1 = arith.constant 1 : index
    %c0_18 = arith.constant 0 : index
    %c0_19 = arith.constant 0 : index
    %31 = vector.load %arg2[%c1, %c0_18, %c0_19] : memref<2x32x288xf32, #tpu.memory_space<vmem>>, vector<1x32x288xf32>
    %32 = vector.shape_cast %31 : vector<1x32x288xf32> to vector<32x288xf32>
    %cst_20 = arith.constant dense<0.000000e+00> : vector<32x256xf32>
    %33 = tpu.matmul %32, %30, %cst_20 {dimension_numbers = #tpu.dot_dimension_numbers<[1], [0], [0], [1], [0, 0, 1, 1], [], []>} : vector<32x288xf32>, vector<288x256xf32>, vector<32x256xf32> -> vector<32x256xf32>
    %c1_21 = arith.constant 1 : index
    %c0_22 = arith.constant 0 : index
    %c0_23 = arith.constant 0 : index
    %34 = vector.load %arg3[%c1_21, %c0_22, %c0_23] : memref<2x32x1xf32, #tpu.memory_space<vmem>>, vector<1x32x1xf32>
    %35 = vector.shape_cast %34 : vector<1x32x1xf32> to vector<32x1xf32>
    %36 = vector.broadcast %35 : vector<32x1xf32> to vector<32x256xf32>
    %37 = arith.addf %33, %36 : vector<32x256xf32>
    %38 = vector.extract_strided_slice %37 {offsets = [0, 0], sizes = [32, 12], strides = [1, 1]} : vector<32x256xf32> to vector<32x12xf32>
    %39 = vector.extract_strided_slice %37 {offsets = [0, 16], sizes = [32, 12], strides = [1, 1]} : vector<32x256xf32> to vector<32x12xf32>
    %40 = vector.extract_strided_slice %37 {offsets = [0, 32], sizes = [32, 12], strides = [1, 1]} : vector<32x256xf32> to vector<32x12xf32>
    %41 = vector.extract_strided_slice %37 {offsets = [0, 48], sizes = [32, 12], strides = [1, 1]} : vector<32x256xf32> to vector<32x12xf32>
    %42 = vector.extract_strided_slice %37 {offsets = [0, 64], sizes = [32, 12], strides = [1, 1]} : vector<32x256xf32> to vector<32x12xf32>
    %43 = vector.extract_strided_slice %37 {offsets = [0, 80], sizes = [32, 12], strides = [1, 1]} : vector<32x256xf32> to vector<32x12xf32>
    %44 = vector.extract_strided_slice %37 {offsets = [0, 96], sizes = [32, 12], strides = [1, 1]} : vector<32x256xf32> to vector<32x12xf32>
    %45 = vector.extract_strided_slice %37 {offsets = [0, 112], sizes = [32, 12], strides = [1, 1]} : vector<32x256xf32> to vector<32x12xf32>
    %46 = vector.extract_strided_slice %37 {offsets = [0, 128], sizes = [32, 12], strides = [1, 1]} : vector<32x256xf32> to vector<32x12xf32>
    %47 = vector.extract_strided_slice %37 {offsets = [0, 144], sizes = [32, 12], strides = [1, 1]} : vector<32x256xf32> to vector<32x12xf32>
    %48 = vector.extract_strided_slice %37 {offsets = [0, 160], sizes = [32, 12], strides = [1, 1]} : vector<32x256xf32> to vector<32x12xf32>
    %49 = vector.extract_strided_slice %37 {offsets = [0, 176], sizes = [32, 12], strides = [1, 1]} : vector<32x256xf32> to vector<32x12xf32>
    %50 = tpu.concatenate %38, %39, %40, %41, %42, %43, %44, %45, %46, %47, %48, %49 in 1 : vector<32x12xf32>, vector<32x12xf32>, vector<32x12xf32>, vector<32x12xf32>, vector<32x12xf32>, vector<32x12xf32>, vector<32x12xf32>, vector<32x12xf32>, vector<32x12xf32>, vector<32x12xf32>, vector<32x12xf32>, vector<32x12xf32> -> vector<32x144xf32>
    %c0_24 = arith.constant 0 : index
    %c0_25 = arith.constant 0 : index
    %c0_26 = arith.constant 0 : index
    %51 = vector.load %arg4[%c0_24, %c0_25, %c0_26] : memref<1x32x144xf32, #tpu.memory_space<vmem>>, vector<1x32x144xf32>
    %52 = vector.shape_cast %51 : vector<1x32x144xf32> to vector<32x144xf32>
    %53 = vector.shape_cast %50 : vector<32x144xf32> to vector<1x32x144xf32>
    tpu.vector_store %arg4[%c0_24, %c0_25, %c0_26], %53 {strides = array<i32>} : memref<1x32x144xf32, #tpu.memory_space<vmem>>, vector<1x32x144xf32>,
    return
  }
  func.func @transform_0(%arg0: i32) -> (i32, i32, i32) {
    %c0_i32 = arith.constant 0 : i32
    %c0_i32_0 = arith.constant 0 : i32
    %c0_i32_1 = arith.constant 0 : i32
    return %arg0, %c0_i32, %c0_i32_0 : i32, i32, i32
  }
  func.func @transform_1(%arg0: i32) -> (i32, i32, i32) {
    %c0_i32 = arith.constant 0 : i32
    %c0_i32_0 = arith.constant 0 : i32
    %c0_i32_1 = arith.constant 0 : i32
    %c0_i32_2 = arith.constant 0 : i32
    return %c0_i32, %c0_i32_0, %c0_i32_1 : i32, i32, i32
  }
  func.func @transform_2(%arg0: i32) -> (i32, i32, i32) {
    %c0_i32 = arith.constant 0 : i32
    %c0_i32_0 = arith.constant 0 : i32
    %c0_i32_1 = arith.constant 0 : i32
    %c0_i32_2 = arith.constant 0 : i32
    return %c0_i32, %c0_i32_0, %c0_i32_1 : i32, i32, i32
  }
  func.func @transform_3(%arg0: i32) -> (i32, i32, i32) {
    %c0_i32 = arith.constant 0 : i32
    %c0_i32_0 = arith.constant 0 : i32
    %c0_i32_1 = arith.constant 0 : i32
    return %arg0, %c0_i32, %c0_i32_0 : i32, i32, i32
  }
}

</mosaic_0001>

<llo_original>
// kernel: tpu_custom_call.1
$region0: #{tpu_custom_call.1}
  #allocation0 [shape = 'u32[]', space=smem, size = 0x4, offset = 0x4, fixed_abs, tag = 'smem constant byte address 0x4 - core index']
  #allocation1 [shape = 'u32[144,128]{1,0:T(1,128)}', space=vmem, size = 0x12000, scoped, tag = 'internal scratch']
  %s0 = inlined_call_operand.hbm [shape: f32[2,32,256], index: 0, kind: input, shape index: {}]
  %s1 = inlined_call_operand.hbm [shape: f32[2,32,288], index: 1, kind: input, shape index: {}]
  %s2 = inlined_call_operand.vmem [shape: f32[2,32,1], index: 2, kind: input, shape index: {}]
  %s3 = inlined_call_operand.hbm [shape: f32[2,32,144], index: 3, kind: output, shape index: {}]
  %s4 = sld [smem:[#allocation0]]
  $region53: #{tpu_custom_call.1} parent=0
    _
  %s6 = ssub.s32 1, %s4
  %s7 = scalar_select 0, %s6, %s4
  $region1: #{tpu_custom_call.1} parent=0
    #allocation2 [shape = 'u8[65536]{0}', space=vmem, size = 0x10000, scoped, tag = 'input window, operand 0']
    #allocation3 [shape = 's32[2]{0}', space=sflag, size = 0x8, scoped, tag = 'scoped memory for tpu_custom_call.1']
    #allocation4 [shape = 's32[2]{0}', space=sflag, size = 0x8, scoped, tag = 'scoped memory for tpu_custom_call.1']
    #allocation5 [shape = 'u8[98304]{0}', space=vmem, size = 0x18000, scoped, tag = 'input window, operand 1, single buffered']
    #allocation6 [shape = 's32[1]{0}', space=sflag, size = 0x4, scoped, tag = 'scoped memory for tpu_custom_call.1']
    #allocation7 [shape = 'u8[65536]{0}', space=vmem, size = 0x10000, scoped, tag = 'output window, operand 0']
    %8 = vsyncpa [#allocation3], 0
    %s9 = scalar_lea.sflag [#allocation3], 1
    %10 = vsyncpa %s9, 0
    %11 = vsyncpa [#allocation6], 0
    %12 = vsyncpa [#allocation4], 0
    %s13 = scalar_lea.sflag [#allocation4], 1
    %14 = vsyncpa %s13, 0
    loop: start=0, step=1, limit=4
    $region2: #{tpu_custom_call.1} parent=1 // loop_pre_header
      _
    $region3: #{tpu_custom_call.1} parent=1 // loop_header
      %s16 = sphi 0, %s20
      %p17 = scmp.ge.s32.totalorder %s16, 4
      %s26 = sphi 0, %s28
      %s29 = sphi 0, %s26
      %s30 = sphi 0, %s29
      %s46 = sphi 0, %s30
      %s50 = sphi 0, %s50
      %s52 = sphi 0, %s50
      %s53 = sphi 0, %s52
      %s67 = sphi 0, %s53
      %s71 = sphi 0, %s71
      %s73 = sphi 0, %s71
      %s74 = sphi 0, %s73
      %s88 = sphi 0, %s74
      %s94 = sphi 0, %s96
      %s97 = sphi 0, %s94
      %s98 = sphi 0, %s97
      %s114 = sphi 0, %s98
    $region4: #{tpu_custom_call.1} parent=1 // loop_header_branch
      %19 = sbr.rel (%p17) target = $region8
    $region5: #{tpu_custom_call.1} parent=1 // loop_body
      %s21 = ssub.s32 %s16, 1
      %s22 = ssub.s32 %s16, 2
      %s23 = sadd.s32 %s16, 1
      %s24 = ssub.s32 %s16, %s23
      %p25 = scmp.eq.s32.totalorder %s24, 0
      %s27 = sadd.s32 %s26, 1
      %s28 = scalar_select %p25, %s26, %s27
      %p31 = pneg %p25
      %p32 = scmp.eq.s32.totalorder %s16, 1
      %p33 = por %p31, %p32
      %p34 = scmp.ne.s32.totalorder %s26, %s29
      %p35 = scmp.eq.s32.totalorder %s16, 0
      %p36 = por %p34, %p35
      %p37 = scmp.ne.s32.totalorder %s26, %s29
      %p38 = scmp.eq.s32.totalorder %s21, 1
      %p39 = por %p37, %p38
      %p40 = scmp.ne.s32.totalorder %s29, %s30
      %p41 = scmp.eq.s32.totalorder %s21, 0
      %p42 = por %p40, %p41
      %p43 = scmp.ne.s32.totalorder %s29, %s30
      %p44 = scmp.eq.s32.totalorder %s22, 1
      %p45 = por %p43, %p44
      %p47 = scmp.ne.s32.totalorder %s30, %s46
      %p48 = scmp.eq.s32.totalorder %s22, 0
      %p49 = por %p47, %p48
      %s51 = sadd.s32 %s50, 1
      %p54 = scmp.eq.s32.totalorder %s16, 1
      %p55 = scmp.ne.s32.totalorder %s50, %s52
      %p56 = scmp.eq.s32.totalorder %s16, 0
      %p57 = por %p55, %p56
      %p58 = scmp.ne.s32.totalorder %s50, %s52
      %p59 = scmp.eq.s32.totalorder %s21, 1
      %p60 = por %p58, %p59
      %p61 = scmp.ne.s32.totalorder %s52, %s53
      %p62 = scmp.eq.s32.totalorder %s21, 0
      %p63 = por %p61, %p62
      %p64 = scmp.ne.s32.totalorder %s52, %s53
      %p65 = scmp.eq.s32.totalorder %s22, 1
      %p66 = por %p64, %p65
      %p68 = scmp.ne.s32.totalorder %s53, %s67
      %p69 = scmp.eq.s32.totalorder %s22, 0
      %p70 = por %p68, %p69
      %s72 = sadd.s32 %s71, 1
      %p75 = scmp.eq.s32.totalorder %s16, 1
      %p76 = scmp.ne.s32.totalorder %s71, %s73
      %p77 = scmp.eq.s32.totalorder %s16, 0
      %p78 = por %p76, %p77
      %p79 = scmp.ne.s32.totalorder %s71, %s73
      %p80 = scmp.eq.s32.totalorder %s21, 1
      %p81 = por %p79, %p80
      %p82 = scmp.ne.s32.totalorder %s73, %s74
      %p83 = scmp.eq.s32.totalorder %s21, 0
      %p84 = por %p82, %p83
      %p85 = scmp.ne.s32.totalorder %s73, %s74
      %p86 = scmp.eq.s32.totalorder %s22, 1
      %p87 = por %p85, %p86
      %p89 = scmp.ne.s32.totalorder %s74, %s88
      %p90 = scmp.eq.s32.totalorder %s22, 0
      %p91 = por %p89, %p90
      %s92 = ssub.s32 %s16, %s23
      %p93 = scmp.eq.s32.totalorder %s92, 0
      %s95 = sadd.s32 %s94, 1
      %s96 = scalar_select %p93, %s94, %s95
      %p99 = pneg %p93
      %p100 = scmp.eq.s32.totalorder %s16, 1
      %p101 = por %p99, %p100
      %p102 = scmp.ne.s32.totalorder %s94, %s97
      %p103 = scmp.eq.s32.totalorder %s16, 0
      %p104 = por %p102, %p103
      %p105 = scmp.ne.s32.totalorder %s94, %s97
      %p106 = scmp.eq.s32.totalorder %s21, 1
      %p107 = por %p105, %p106
      %p108 = scmp.ne.s32.totalorder %s97, %s98
      %p109 = scmp.eq.s32.totalorder %s21, 0
      %p110 = por %p108, %p109
      %p111 = scmp.ne.s32.totalorder %s97, %s98
      %p112 = scmp.eq.s32.totalorder %s22, 1
      %p113 = por %p111, %p112
      %p115 = scmp.ne.s32.totalorder %s98, %s114
      %p116 = scmp.eq.s32.totalorder %s22, 0
      %p117 = por %p115, %p116
      %p118 = scmp.le.s32.totalorder 1, %s16
      %p119 = scmp.lt.s32.totalorder %s16, 3
      %p120 = pnand %p118, %p119
      %p121 = pneg %p120
      // Predicated region
      $region9: #{tpu_custom_call.1} parent=5 // pred_check
        _
      $region10: #{tpu_custom_call.1} parent=5 // pred_check_branch
        %123 = sbr.rel (%p120) target = $region12
      $region11: #{tpu_custom_call.1} parent=5 // pred_region
        %s124 = ssub.s32 %s16, 1
        // Predicated region
        $region13: #{tpu_custom_call.1} parent=11 // pred_check
          %p125 = pneg %p63
        $region14: #{tpu_custom_call.1} parent=11 // pred_check_branch
          %127 = sbr.rel (%p125) target = $region16
        $region15: #{tpu_custom_call.1} parent=11 // pred_region
          %s129 = ssub.s32 3072, 3072
          %130 = vsyncadd [#allocation6], %s129
          %s131 = sshll.u32 [#allocation5], 4
          %s132 = int_to_ptr.vmem [resolvable:$true] %s131
          %137 = dma.hbm_to_vmem [thread:$0]  %s1, 3072, %s132, [#allocation6], 384, 384, 24
        $region16: #{tpu_custom_call.1} parent=11 // pred_fallthru
          _
        // Predicated region
        $region17: #{tpu_custom_call.1} parent=11 // pred_check
          %p138 = pneg %p84
        $region18: #{tpu_custom_call.1} parent=11 // pred_check_branch
          %140 = sbr.rel (%p138) target = $region20
        $region19: #{tpu_custom_call.1} parent=11 // pred_region
          _
        $region20: #{tpu_custom_call.1} parent=11 // pred_fallthru
          _
      $region12: #{tpu_custom_call.1} parent=5 // pred_fallthru
        _
      %p141 = scmp.lt.s32.totalorder %s16, 2
      // Predicated region
      $region21: #{tpu_custom_call.1} parent=5 // pred_check
        %p142 = pneg %p141
      $region22: #{tpu_custom_call.1} parent=5 // pred_check_branch
        %144 = sbr.rel (%p142) target = $region24
      $region23: #{tpu_custom_call.1} parent=5 // pred_region
        // Predicated region
        $region25: #{tpu_custom_call.1} parent=23 // pred_check
          %p145 = pneg %p36
        $region26: #{tpu_custom_call.1} parent=23 // pred_check_branch
          %147 = sbr.rel (%p145) target = $region28
        $region27: #{tpu_custom_call.1} parent=23 // pred_region
          %s148 = sand.u32 %s26, 1
          %s149 = scalar_lea.sflag [#allocation3], %s148
          %s150 = sand.u32 %s26, 1
          %s151 = smul.addr %s150, 64
          %s152 = scalar_lea.vmem [#allocation2], %s151
          %s154 = ssub.s32 1024, 1024
          %155 = vsyncadd %s149, %s154
          %s156 = smul.addr %s16, 8
          %s157 = smul.addr %s156, 128
          %s158 = scalar_lea.hbm %s0, %s157
          %s159 = sshll.u32 %s152, 4
          %s160 = int_to_ptr.vmem [resolvable:$true] %s159
          %165 = dma.hbm_to_vmem [thread:$0]  %s158, 1024, %s160, %s149, 256, 256, 16
        $region28: #{tpu_custom_call.1} parent=23 // pred_fallthru
          _
      $region24: #{tpu_custom_call.1} parent=5 // pred_fallthru
        _
      %p166 = scmp.le.s32.totalorder 1, %s16
      %p167 = scmp.lt.s32.totalorder %s16, 3
      %p168 = pnand %p166, %p167
      %p169 = pneg %p168
      // Predicated region
      $region29: #{tpu_custom_call.1} parent=5 // pred_check
        _
      $region30: #{tpu_custom_call.1} parent=5 // pred_check_branch
        %171 = sbr.rel (%p168) target = $region32
      $region31: #{tpu_custom_call.1} parent=5 // pred_region
        %s172 = ssub.s32 %s16, 1
        %s173 = sand.u32 %s29, 1
        %s174 = scalar_lea.sflag [#allocation3], %s173
        %s175 = sand.u32 %s29, 1
        %s176 = smul.addr %s175, 64
        %s177 = scalar_lea.vmem [#allocation2], %s176
        // Predicated region
        $region33: #{tpu_custom_call.1} parent=31 // pred_check
          %p178 = pneg %p42
        $region34: #{tpu_custom_call.1} parent=31 // pred_check_branch
          %180 = sbr.rel (%p178) target = $region36
        $region35: #{tpu_custom_call.1} parent=31 // pred_region
          %181 = dma.done %s174, 1024
        $region36: #{tpu_custom_call.1} parent=31 // pred_fallthru
          _
        // Predicated region
        $region37: #{tpu_custom_call.1} parent=31 // pred_check
          %p182 = pneg %p63
        $region38: #{tpu_custom_call.1} parent=31 // pred_check_branch
          %184 = sbr.rel (%p182) target = $region40
        $region39: #{tpu_custom_call.1} parent=31 // pred_region
          %185 = dma.done [#allocation6], 3072
        $region40: #{tpu_custom_call.1} parent=31 // pred_fallthru
          _
        %s186 = sand.u32 %s29, 1
        %s187 = scalar_lea.sflag [#allocation3], %s186
        %s188 = sand.u32 %s29, 1
        %s189 = smul.addr %s188, 64
        %s190 = scalar_lea.vmem [#allocation2], %s189
        %p191 = pneg %p42
        %p192 = pneg %p39
        %p193 = pneg %p63
        %p194 = pneg %p60
        %p195 = pneg %p84
        %p196 = pneg %p81
        %p197 = pneg %p110
        %p198 = pneg %p107
        %s199 = sand.u32 %s97, 1
        %s200 = scalar_lea.sflag [#allocation4], %s199
        %s201 = sand.u32 %s97, 1
        %s202 = smul.addr %s201, 64
        %s203 = scalar_lea.vmem [#allocation7], %s202
        %v204 = vld [vmem:[%s177] sm:$0xff]
        %v205 = vld [vmem:[%s177 + $0x8] sm:$0xff]
        %v206 = vld [vmem:[%s177 + $0x10] sm:$0xff]
        %v207 = vld [vmem:[%s177 + $0x18] sm:$0xff]
        %v208 = vld [vmem:[%s177 + $0x20] sm:$0xff]
        %v209 = vld [vmem:[%s177 + $0x28] sm:$0xff]
        %v210 = vld [vmem:[%s177 + $0x30] sm:$0xff]
        %v211 = vld [vmem:[%s177 + $0x38] sm:$0xff]
        %v212 = vmax.f32 %v204, 0.0
        %v213 = vmax.f32 %v205, 0.0
        %v214 = vmax.f32 %v206, 0.0
        %v215 = vmax.f32 %v207, 0.0
        %v216 = vmax.f32 %v208, 0.0
        %v217 = vmax.f32 %v209, 0.0
        %v218 = vmax.f32 %v210, 0.0
        %v219 = vmax.f32 %v211, 0.0
        %220 = vrot.lane.b32.xlu0 %v212, 127
        %v221 = vpop.permute.xlu0 %220
        %222 = vrot.lane.b32.xlu0 %v214, 127
        %v223 = vpop.permute.xlu0 %222
        %224 = vrot.lane.b32.xlu0 %v216, 127
        %v225 = vpop.permute.xlu0 %224
        %226 = vrot.lane.b32.xlu0 %v218, 127
        %v227 = vpop.permute.xlu0 %226
        %228 = vrot.lane.b32.xlu0 %v213, 127
        %v229 = vpop.permute.xlu0 %228
        %230 = vrot.lane.b32.xlu0 %v215, 127
        %v231 = vpop.permute.xlu0 %230
        %232 = vrot.lane.b32.xlu0 %v217, 127
        %v233 = vpop.permute.xlu0 %232
        %234 = vrot.lane.b32.xlu0 %v219, 127
        %v235 = vpop.permute.xlu0 %234
        %v236 = vlaneseq
        %v237 = vand.u32 %v236, 127
        %vm238 = vcmp.lt.s32.totalorder %v237, 127
        %v239 = vsel %vm238, %v221, %v229
        %v240 = vsel %vm238, %v223, %v231
        %v241 = vsel %vm238, %v225, %v233
        %v242 = vsel %vm238, %v227, %v235
        %v243 = vsel %vm238, %v229, %v221
        %v244 = vsel %vm238, %v231, %v223
        %v245 = vsel %vm238, %v233, %v225
        %v246 = vsel %vm238, %v235, %v227
        %247 = vrot.lane.b32.xlu0 %v212, 126
        %v248 = vpop.permute.xlu0 %247
        %249 = vrot.lane.b32.xlu0 %v214, 126
        %v250 = vpop.permute.xlu0 %249
        %251 = vrot.lane.b32.xlu0 %v216, 126
        %v252 = vpop.permute.xlu0 %251
        %253 = vrot.lane.b32.xlu0 %v218, 126
        %v254 = vpop.permute.xlu0 %253
        %255 = vrot.lane.b32.xlu0 %v213, 126
        %v256 = vpop.permute.xlu0 %255
        %257 = vrot.lane.b32.xlu0 %v215, 126
        %v258 = vpop.permute.xlu0 %257
        %259 = vrot.lane.b32.xlu0 %v217, 126
        %v260 = vpop.permute.xlu0 %259
        %261 = vrot.lane.b32.xlu0 %v219, 126
        %v262 = vpop.permute.xlu0 %261
        %vm263 = vcmp.lt.s32.totalorder %v237, 126
        %v264 = vsel %vm263, %v248, %v256
        %v265 = vsel %vm263, %v250, %v258
        %v266 = vsel %vm263, %v252, %v260
        %v267 = vsel %vm263, %v254, %v262
        %v268 = vsel %vm263, %v256, %v248
        %v269 = vsel %vm263, %v258, %v250
        %v270 = vsel %vm263, %v260, %v252
        %v271 = vsel %vm263, %v262, %v254
        %272 = vrot.lane.b32.xlu0 %v212, 112
        %v273 = vpop.permute.xlu0 %272
        %274 = vrot.lane.b32.xlu0 %v214, 112
        %v275 = vpop.permute.xlu0 %274
        %276 = vrot.lane.b32.xlu0 %v216, 112
        %v277 = vpop.permute.xlu0 %276
        %278 = vrot.lane.b32.xlu0 %v218, 112
        %v279 = vpop.permute.xlu0 %278
        %280 = vrot.lane.b32.xlu0 %v213, 112
        %v281 = vpop.permute.xlu0 %280
        %282 = vrot.lane.b32.xlu0 %v215, 112
        %v283 = vpop.permute.xlu0 %282
        %284 = vrot.lane.b32.xlu0 %v217, 112
        %v285 = vpop.permute.xlu0 %284
        %286 = vrot.lane.b32.xlu0 %v219, 112
        %v287 = vpop.permute.xlu0 %286
        %vm288 = vcmp.lt.s32.totalorder %v237, 112
        %v289 = vsel %vm288, %v273, %v281
        %v290 = vsel %vm288, %v275, %v283
        %v291 = vsel %vm288, %v277, %v285
        %v292 = vsel %vm288, %v279, %v287
        %v293 = vsel %vm288, %v281, %v273
        %v294 = vsel %vm288, %v283, %v275
        %v295 = vsel %vm288, %v285, %v277
        %v296 = vsel %vm288, %v287, %v279
        %297 = vrot.lane.b32.xlu0 %v212, 111
        %v298 = vpop.permute.xlu0 %297
        %299 = vrot.lane.b32.xlu0 %v214, 111
        %v300 = vpop.permute.xlu0 %299
        %301 = vrot.lane.b32.xlu0 %v216, 111
        %v302 = vpop.permute.xlu0 %301
        %303 = vrot.lane.b32.xlu0 %v218, 111
        %v304 = vpop.permute.xlu0 %303
        %305 = vrot.lane.b32.xlu0 %v213, 111
        %v306 = vpop.permute.xlu0 %305
        %307 = vrot.lane.b32.xlu0 %v215, 111
        %v308 = vpop.permute.xlu0 %307
        %309 = vrot.lane.b32.xlu0 %v217, 111
        %v310 = vpop.permute.xlu0 %309
        %311 = vrot.lane.b32.xlu0 %v219, 111
        %v312 = vpop.permute.xlu0 %311
        %vm313 = vcmp.lt.s32.totalorder %v237, 111
        %v314 = vsel %vm313, %v298, %v306
        %v315 = vsel %vm313, %v300, %v308
        %v316 = vsel %vm313, %v302, %v310
        %v317 = vsel %vm313, %v304, %v312
        %v318 = vsel %vm313, %v306, %v298
        %v319 = vsel %vm313, %v308, %v300
        %v320 = vsel %vm313, %v310, %v302
        %v321 = vsel %vm313, %v312, %v304
        %322 = vrot.lane.b32.xlu0 %v212, 110
        %v323 = vpop.permute.xlu0 %322
        %324 = vrot.lane.b32.xlu0 %v214, 110
        %v325 = vpop.permute.xlu0 %324
        %326 = vrot.lane.b32.xlu0 %v216, 110
        %v327 = vpop.permute.xlu0 %326
        %328 = vrot.lane.b32.xlu0 %v218, 110
        %v329 = vpop.permute.xlu0 %328
        %330 = vrot.lane.b32.xlu0 %v213, 110
        %v331 = vpop.permute.xlu0 %330
        %332 = vrot.lane.b32.xlu0 %v215, 110
        %v333 = vpop.permute.xlu0 %332
        %334 = vrot.lane.b32.xlu0 %v217, 110
        %v335 = vpop.permute.xlu0 %334
        %336 = vrot.lane.b32.xlu0 %v219, 110
        %v337 = vpop.permute.xlu0 %336
        %vm338 = vcmp.lt.s32.totalorder %v237, 110
        %v339 = vsel %vm338, %v323, %v331
        %v340 = vsel %vm338, %v325, %v333
        %v341 = vsel %vm338, %v327, %v335
        %v342 = vsel %vm338, %v329, %v337
        %v343 = vsel %vm338, %v331, %v323
        %v344 = vsel %vm338, %v333, %v325
        %v345 = vsel %vm338, %v335, %v327
        %v346 = vsel %vm338, %v337, %v329
        %347 = vrot.lane.b32.xlu0 %v212, 96
        %v348 = vpop.permute.xlu0 %347
        %349 = vrot.lane.b32.xlu0 %v214, 96
        %v350 = vpop.permute.xlu0 %349
        %351 = vrot.lane.b32.xlu0 %v216, 96
        %v352 = vpop.permute.xlu0 %351
        %353 = vrot.lane.b32.xlu0 %v218, 96
        %v354 = vpop.permute.xlu0 %353
        %355 = vrot.lane.b32.xlu0 %v213, 96
        %v356 = vpop.permute.xlu0 %355
        %357 = vrot.lane.b32.xlu0 %v215, 96
        %v358 = vpop.permute.xlu0 %357
        %359 = vrot.lane.b32.xlu0 %v217, 96
        %v360 = vpop.permute.xlu0 %359
        %361 = vrot.lane.b32.xlu0 %v219, 96
        %v362 = vpop.permute.xlu0 %361
        %vm363 = vcmp.lt.s32.totalorder %v237, 96
        %v364 = vsel %vm363, %v348, %v356
        %v365 = vsel %vm363, %v350, %v358
        %v366 = vsel %vm363, %v352, %v360
        %v367 = vsel %vm363, %v354, %v362
        %v368 = vsel %vm363, %v356, %v348
        %v369 = vsel %vm363, %v358, %v350
        %v370 = vsel %vm363, %v360, %v352
        %v371 = vsel %vm363, %v362, %v354
        %372 = vrot.lane.b32.xlu0 %v212, 95
        %v373 = vpop.permute.xlu0 %372
        %374 = vrot.lane.b32.xlu0 %v214, 95
        %v375 = vpop.permute.xlu0 %374
        %376 = vrot.lane.b32.xlu0 %v216, 95
        %v377 = vpop.permute.xlu0 %376
        %378 = vrot.lane.b32.xlu0 %v218, 95
        %v379 = vpop.permute.xlu0 %378
        %380 = vrot.lane.b32.xlu0 %v213, 95
        %v381 = vpop.permute.xlu0 %380
        %382 = vrot.lane.b32.xlu0 %v215, 95
        %v383 = vpop.permute.xlu0 %382
        %384 = vrot.lane.b32.xlu0 %v217, 95
        %v385 = vpop.permute.xlu0 %384
        %386 = vrot.lane.b32.xlu0 %v219, 95
        %v387 = vpop.permute.xlu0 %386
        %vm388 = vcmp.lt.s32.totalorder %v237, 95
        %v389 = vsel %vm388, %v373, %v381
        %v390 = vsel %vm388, %v375, %v383
        %v391 = vsel %vm388, %v377, %v385
        %v392 = vsel %vm388, %v379, %v387
        %v393 = vsel %vm388, %v381, %v373
        %v394 = vsel %vm388, %v383, %v375
        %v395 = vsel %vm388, %v385, %v377
        %v396 = vsel %vm388, %v387, %v379
        %397 = vrot.lane.b32.xlu0 %v212, 94
        %v398 = vpop.permute.xlu0 %397
        %399 = vrot.lane.b32.xlu0 %v214, 94
        %v400 = vpop.permute.xlu0 %399
        %401 = vrot.lane.b32.xlu0 %v216, 94
        %v402 = vpop.permute.xlu0 %401
        %403 = vrot.lane.b32.xlu0 %v218, 94
        %v404 = vpop.permute.xlu0 %403
        %405 = vrot.lane.b32.xlu0 %v213, 94
        %v406 = vpop.permute.xlu0 %405
        %407 = vrot.lane.b32.xlu0 %v215, 94
        %v408 = vpop.permute.xlu0 %407
        %409 = vrot.lane.b32.xlu0 %v217, 94
        %v410 = vpop.permute.xlu0 %409
        %411 = vrot.lane.b32.xlu0 %v219, 94
        %v412 = vpop.permute.xlu0 %411
        %vm413 = vcmp.lt.s32.totalorder %v237, 94
        %v414 = vsel %vm413, %v398, %v406
        %v415 = vsel %vm413, %v400, %v408
        %v416 = vsel %vm413, %v402, %v410
        %v417 = vsel %vm413, %v404, %v412
        %v418 = vsel %vm413, %v406, %v398
        %v419 = vsel %vm413, %v408, %v400
        %v420 = vsel %vm413, %v410, %v402
        %v421 = vsel %vm413, %v412, %v404
        %v422 = vld [vmem:[#allocation5] sm:$0xff]
        %v423 = vld [vmem:[#allocation5 + $0x8] sm:$0xff]
        %v424 = vld [vmem:[#allocation5 + $0x10] sm:$0xff]
        %v425 = vld [vmem:[#allocation5 + $0x18] sm:$0xff]
        %v426 = vld [vmem:[#allocation5 + $0x20] sm:$0xff]
        %v427 = vld [vmem:[#allocation5 + $0x28] sm:$0xff]
        %v428 = vld [vmem:[#allocation5 + $0x30] sm:$0xff]
        %v429 = vld [vmem:[#allocation5 + $0x38] sm:$0xff]
        %v430 = vld [vmem:[#allocation5 + $0x40] sm:$0xff]
        %v431 = vld [vmem:[#allocation5 + $0x48] sm:$0xff]
        %v432 = vld [vmem:[#allocation5 + $0x50] sm:$0xff]
        %v433 = vld [vmem:[#allocation5 + $0x58] sm:$0xff]
        %v434 = vld [vmem:[%s2] sm:$0xff]
        %v435 = vld [vmem:[%s2 + $0x8] sm:$0xff]
        %v436 = vld [vmem:[%s2 + $0x10] sm:$0xff]
        %v437 = vld [vmem:[%s2 + $0x18] sm:$0xff]
        %439 = vset.pattern.permute.xlu0 0
        %440 = vperm.xlu0 %439, %v434
        %v441 = vpop.permute.xlu0 %440
        %444 = vset.pattern.permute.xlu0 0
        %445 = vperm.xlu0 %444, %v435
        %v446 = vpop.permute.xlu0 %445
        %449 = vset.pattern.permute.xlu0 0
        %450 = vperm.xlu0 %449, %v436
        %v451 = vpop.permute.xlu0 %450
        %454 = vset.pattern.permute.xlu0 0
        %455 = vperm.xlu0 %454, %v437
        %v456 = vpop.permute.xlu0 %455
        %vm458 = vcmask 261120
        %v460 = vsel %vm458, %v424, 0
        %v463 = vsel %vm458, %v427, 0
        %v466 = vsel %vm458, %v430, 0
        %v469 = vsel %vm458, %v433, 0
        %471 = vmatprep.subr.mxu0 %v213
        %472 = vmatpush1.msra.mxu0 %v212
        %473 = vmatprep.subr.mxu0 %v215
        %474 = vmatpush1.msra.mxu0 %v214
        %475 = vmatprep.subr.mxu0 %v217
        %476 = vmatpush1.msra.mxu0 %v216
        %477 = vmatprep.subr.mxu0 %v219
        %478 = vmatpush1.msra.mxu0 %v218
        %479 = vmatprep.subr.mxu0 %v243
        %480 = vmatpush1.msra.mxu0 %v239
        %481 = vmatprep.subr.mxu0 %v244
        %482 = vmatpush1.msra.mxu0 %v240
        %483 = vmatprep.subr.mxu0 %v245
        %484 = vmatpush1.msra.mxu0 %v241
        %485 = vmatprep.subr.mxu0 %v246
        %486 = vmatpush1.msra.mxu0 %v242
        %487 = vmatprep.subr.mxu0 %v268
        %488 = vmatpush1.msra.mxu0 %v264
        %489 = vmatprep.subr.mxu0 %v269
        %490 = vmatpush1.msra.mxu0 %v265
        %491 = vmatprep.subr.mxu0 %v270
        %492 = vmatpush1.msra.mxu0 %v266
        %493 = vmatprep.subr.mxu0 %v271
        %494 = vmatpush1.msra.mxu0 %v267
        %495 = vmatprep.subr.mxu0 %v293
        %496 = vmatpush1.msra.mxu0 %v289
        %497 = vmatprep.subr.mxu0 %v294
        %498 = vmatpush1.msra.mxu0 %v290
        %499 = vmatprep.subr.mxu0 %v295
        %500 = vmatpush1.msra.mxu0 %v291
        %501 = vmatprep.subr.mxu0 %v296
        %502 = vmatpush1.msra.mxu0 %v292
        %503 = vmatprep.subr.mxu0 %v318
        %504 = vmatpush1.msra.mxu0 %v314
        %505 = vmatprep.subr.mxu0 %v319
        %506 = vmatpush1.msra.mxu0 %v315
        %507 = vmatprep.subr.mxu0 %v320
        %508 = vmatpush1.msra.mxu0 %v316
        %509 = vmatprep.subr.mxu0 %v321
        %510 = vmatpush1.msra.mxu0 %v317
        %511 = vmatprep.subr.mxu0 %v343
        %512 = vmatpush1.msra.mxu0 %v339
        %513 = vmatprep.subr.mxu0 %v344
        %514 = vmatpush1.msra.mxu0 %v340
        %515 = vmatprep.subr.mxu0 %v345
        %516 = vmatpush1.msra.mxu0 %v341
        %517 = vmatprep.subr.mxu0 %v346
        %518 = vmatpush1.msra.mxu0 %v342
        %519 = vmatprep.subr.mxu0 %v368
        %520 = vmatpush1.msra.mxu0 %v364
        %521 = vmatprep.subr.mxu0 %v369
        %522 = vmatpush1.msra.mxu0 %v365
        %523 = vmatprep.subr.mxu0 %v370
        %524 = vmatpush1.msra.mxu0 %v366
        %525 = vmatprep.subr.mxu0 %v371
        %526 = vmatpush1.msra.mxu0 %v367
        %527 = vmatprep.subr.mxu0 %v393
        %528 = vmatpush1.msra.mxu0 %v389
        %529 = vmatprep.subr.mxu0 %v394
        %530 = vmatpush1.msra.mxu0 %v390
        %531 = vmatprep.subr.mxu0 %v395
        %532 = vmatpush1.msra.mxu0 %v391
        %533 = vmatprep.subr.mxu0 %v396
        %534 = vmatpush1.msra.mxu0 %v392
        %535 = vmatprep.mubr.f32.mxu0 %v423
        %536 = vmatmul.mubr.f32.gmra.mrb[0].mxu0 %v422
        %v537 = vpop.f32.mrb[0].mxu0
        %v538 = vadd.f32 %v441, %v537
        %v539 = vpop.f32.mrb[0].mxu0
        %v540 = vadd.f32 %v441, %v539
        %541 = vmatprep.mubr.f32.mxu0 %v426
        %542 = vmatmul.mubr.f32.gmra.mrb[0].mxu0 %v425
        %v543 = vpop.f32.mrb[0].mxu0
        %v544 = vadd.f32 %v446, %v543
        %v545 = vpop.f32.mrb[0].mxu0
        %v546 = vadd.f32 %v446, %v545
        %547 = vmatprep.mubr.f32.mxu0 %v429
        %548 = vmatmul.mubr.f32.gmra.mrb[0].mxu0 %v428
        %v549 = vpop.f32.mrb[0].mxu0
        %v550 = vadd.f32 %v451, %v549
        %v551 = vpop.f32.mrb[0].mxu0
        %v552 = vadd.f32 %v451, %v551
        %553 = vmatprep.mubr.f32.mxu0 %v432
        %554 = vmatmul.mubr.f32.gmra.mrb[0].mxu0 %v431
        %v555 = vpop.f32.mrb[0].mxu0
        %v556 = vadd.f32 %v456, %v555
        %v557 = vpop.f32.mrb[0].mxu0
        %v558 = vadd.f32 %v456, %v557
        %559 = vdwg.mxu0
        %560 = vmatprep.subr.mxu0 %v418
        %561 = vmatpush1.msra.mxu0 %v414
        %562 = vmatprep.subr.mxu0 %v419
        %563 = vmatpush1.msra.mxu0 %v415
        %564 = vmatprep.subr.mxu0 %v420
        %565 = vmatpush1.msra.mxu0 %v416
        %566 = vmatprep.subr.mxu0 %v421
        %567 = vmatpush1.msra.mxu0 %v417
        %568 = vmatprep.subr.mxu0 0.0
        %569 = vmatpush1.msra.mxu0 0.0
        %570 = vmatprep.subr.mxu0 0.0
        %571 = vmatpush1.msra.mxu0 0.0
        %572 = vmatprep.subr.mxu0 0.0
        %573 = vmatpush1.msra.mxu0 0.0
        %574 = vmatprep.subr.mxu0 0.0
        %575 = vmatpush1.msra.mxu0 0.0
        %576 = vmatprep.subr.mxu0 0.0
        %577 = vmatpush1.msra.mxu0 0.0
        %578 = vmatprep.subr.mxu0 0.0
        %579 = vmatpush1.msra.mxu0 0.0
        %580 = vmatprep.subr.mxu0 0.0
        %581 = vmatpush1.msra.mxu0 0.0
        %582 = vmatprep.subr.mxu0 0.0
        %583 = vmatpush1.msra.mxu0 0.0
        %584 = vmatprep.subr.mxu0 0.0
        %585 = vmatpush1.msra.mxu0 0.0
        %586 = vmatprep.subr.mxu0 0.0
        %587 = vmatpush1.msra.mxu0 0.0
        %588 = vmatprep.subr.mxu0 0.0
        %589 = vmatpush1.msra.mxu0 0.0
        %590 = vmatprep.subr.mxu0 0.0
        %591 = vmatpush1.msra.mxu0 0.0
        %592 = vmatprep.subr.mxu0 0.0
        %593 = vmatpush1.msra.mxu0 0.0
        %594 = vmatprep.subr.mxu0 0.0
        %595 = vmatpush1.msra.mxu0 0.0
        %596 = vmatprep.subr.mxu0 0.0
        %597 = vmatpush1.msra.mxu0 0.0
        %598 = vmatprep.subr.mxu0 0.0
        %599 = vmatpush1.msra.mxu0 0.0
        %600 = vmatprep.subr.mxu0 0.0
        %601 = vmatpush1.msra.mxu0 0.0
        %602 = vmatprep.subr.mxu0 0.0
        %603 = vmatpush1.msra.mxu0 0.0
        %604 = vmatprep.subr.mxu0 0.0
        %605 = vmatpush1.msra.mxu0 0.0
        %606 = vmatprep.subr.mxu0 0.0
        %607 = vmatpush1.msra.mxu0 0.0
        %608 = vmatprep.subr.mxu0 0.0
        %609 = vmatpush1.msra.mxu0 0.0
        %610 = vmatprep.subr.mxu0 0.0
        %611 = vmatpush1.msra.mxu0 0.0
        %612 = vmatprep.subr.mxu0 0.0
        %613 = vmatpush1.msra.mxu0 0.0
        %614 = vmatprep.subr.mxu0 0.0
        %615 = vmatpush1.msra.mxu0 0.0
        %616 = vmatprep.subr.mxu0 0.0
        %617 = vmatpush1.msra.mxu0 0.0
        %618 = vmatprep.subr.mxu0 0.0
        %619 = vmatpush1.msra.mxu0 0.0
        %620 = vmatprep.subr.mxu0 0.0
        %621 = vmatpush1.msra.mxu0 0.0
        %622 = vmatprep.subr.mxu0 0.0
        %623 = vmatpush1.msra.mxu0 0.0
        %624 = vmatprep.mubr.f32.mxu0 0.0
        %625 = vmatmul.mubr.f32.gmra.mrb[0].mxu0 %v460
        %v626 = vpop.f32.mrb[0].mxu0
        %v627 = vadd.f32 %v538, %v626
        %v628 = vpop.f32.mrb[0].mxu0
        %v629 = vadd.f32 %v540, %v628
        %630 = vmatprep.mubr.f32.mxu0 0.0
        %631 = vmatmul.mubr.f32.gmra.mrb[0].mxu0 %v463
        %v632 = vpop.f32.mrb[0].mxu0
        %v633 = vadd.f32 %v544, %v632
        %v634 = vpop.f32.mrb[0].mxu0
        %v635 = vadd.f32 %v546, %v634
        %636 = vmatprep.mubr.f32.mxu0 0.0
        %637 = vmatmul.mubr.f32.gmra.mrb[0].mxu0 %v466
        %v638 = vpop.f32.mrb[0].mxu0
        %v639 = vadd.f32 %v550, %v638
        %v640 = vpop.f32.mrb[0].mxu0
        %v641 = vadd.f32 %v552, %v640
        %642 = vmatprep.mubr.f32.mxu0 0.0
        %643 = vmatmul.mubr.f32.gmra.mrb[0].mxu0 %v469
        %v644 = vpop.f32.mrb[0].mxu0
        %v645 = vadd.f32 %v556, %v644
        %v646 = vpop.f32.mrb[0].mxu0
        %v647 = vadd.f32 %v558, %v646
        %648 = vdwg.mxu0
        %v649 = vmax.f32 %v627, 0.0
        %v650 = vmax.f32 %v629, 0.0
        %v651 = vmax.f32 %v633, 0.0
        %v652 = vmax.f32 %v635, 0.0
        %v653 = vmax.f32 %v639, 0.0
        %v654 = vmax.f32 %v641, 0.0
        %v655 = vmax.f32 %v645, 0.0
        %v656 = vmax.f32 %v647, 0.0
        %657 = vrot.lane.b32.xlu0 %v649, 127
        %v658 = vpop.permute.xlu0 %657
        %659 = vrot.lane.b32.xlu0 %v651, 127
        %v660 = vpop.permute.xlu0 %659
        %661 = vrot.lane.b32.xlu0 %v653, 127
        %v662 = vpop.permute.xlu0 %661
        %663 = vrot.lane.b32.xlu0 %v655, 127
        %v664 = vpop.permute.xlu0 %663
        %665 = vrot.lane.b32.xlu0 %v650, 127
        %v666 = vpop.permute.xlu0 %665
        %667 = vrot.lane.b32.xlu0 %v652, 127
        %v668 = vpop.permute.xlu0 %667
        %669 = vrot.lane.b32.xlu0 %v654, 127
        %v670 = vpop.permute.xlu0 %669
        %671 = vrot.lane.b32.xlu0 %v656, 127
        %v672 = vpop.permute.xlu0 %671
        %v673 = vsel %vm238, %v658, %v666
        %v674 = vsel %vm238, %v660, %v668
        %v675 = vsel %vm238, %v662, %v670
        %v676 = vsel %vm238, %v664, %v672
        %v677 = vsel %vm238, %v666, %v658
        %v678 = vsel %vm238, %v668, %v660
        %v679 = vsel %vm238, %v670, %v662
        %v680 = vsel %vm238, %v672, %v664
        %681 = vrot.lane.b32.xlu0 %v649, 126
        %v682 = vpop.permute.xlu0 %681
        %683 = vrot.lane.b32.xlu0 %v651, 126
        %v684 = vpop.permute.xlu0 %683
        %685 = vrot.lane.b32.xlu0 %v653, 126
        %v686 = vpop.permute.xlu0 %685
        %687 = vrot.lane.b32.xlu0 %v655, 126
        %v688 = vpop.permute.xlu0 %687
        %689 = vrot.lane.b32.xlu0 %v650, 126
        %v690 = vpop.permute.xlu0 %689
        %691 = vrot.lane.b32.xlu0 %v652, 126
        %v692 = vpop.permute.xlu0 %691
        %693 = vrot.lane.b32.xlu0 %v654, 126
        %v694 = vpop.permute.xlu0 %693
        %695 = vrot.lane.b32.xlu0 %v656, 126
        %v696 = vpop.permute.xlu0 %695
        %v697 = vsel %vm263, %v682, %v690
        %v698 = vsel %vm263, %v684, %v692
        %v699 = vsel %vm263, %v686, %v694
        %v700 = vsel %vm263, %v688, %v696
        %v701 = vsel %vm263, %v690, %v682
        %v702 = vsel %vm263, %v692, %v684
        %v703 = vsel %vm263, %v694, %v686
        %v704 = vsel %vm263, %v696, %v688
        %705 = vrot.lane.b32.xlu0 %v649, 112
        %v706 = vpop.permute.xlu0 %705
        %707 = vrot.lane.b32.xlu0 %v651, 112
        %v708 = vpop.permute.xlu0 %707
        %709 = vrot.lane.b32.xlu0 %v653, 112
        %v710 = vpop.permute.xlu0 %709
        %711 = vrot.lane.b32.xlu0 %v655, 112
        %v712 = vpop.permute.xlu0 %711
        %713 = vrot.lane.b32.xlu0 %v650, 112
        %v714 = vpop.permute.xlu0 %713
        %715 = vrot.lane.b32.xlu0 %v652, 112
        %v716 = vpop.permute.xlu0 %715
        %717 = vrot.lane.b32.xlu0 %v654, 112
        %v718 = vpop.permute.xlu0 %717
        %719 = vrot.lane.b32.xlu0 %v656, 112
        %v720 = vpop.permute.xlu0 %719
        %v721 = vsel %vm288, %v706, %v714
        %v722 = vsel %vm288, %v708, %v716
        %v723 = vsel %vm288, %v710, %v718
        %v724 = vsel %vm288, %v712, %v720
        %v725 = vsel %vm288, %v714, %v706
        %v726 = vsel %vm288, %v716, %v708
        %v727 = vsel %vm288, %v718, %v710
        %v728 = vsel %vm288, %v720, %v712
        %729 = vrot.lane.b32.xlu0 %v649, 111
        %v730 = vpop.permute.xlu0 %729
        %731 = vrot.lane.b32.xlu0 %v651, 111
        %v732 = vpop.permute.xlu0 %731
        %733 = vrot.lane.b32.xlu0 %v653, 111
        %v734 = vpop.permute.xlu0 %733
        %735 = vrot.lane.b32.xlu0 %v655, 111
        %v736 = vpop.permute.xlu0 %735
        %737 = vrot.lane.b32.xlu0 %v650, 111
        %v738 = vpop.permute.xlu0 %737
        %739 = vrot.lane.b32.xlu0 %v652, 111
        %v740 = vpop.permute.xlu0 %739
        %741 = vrot.lane.b32.xlu0 %v654, 111
        %v742 = vpop.permute.xlu0 %741
        %743 = vrot.lane.b32.xlu0 %v656, 111
        %v744 = vpop.permute.xlu0 %743
        %v745 = vsel %vm313, %v730, %v738
        %v746 = vsel %vm313, %v732, %v740
        %v747 = vsel %vm313, %v734, %v742
        %v748 = vsel %vm313, %v736, %v744
        %v749 = vsel %vm313, %v738, %v730
        %v750 = vsel %vm313, %v740, %v732
        %v751 = vsel %vm313, %v742, %v734
        %v752 = vsel %vm313, %v744, %v736
        %753 = vrot.lane.b32.xlu0 %v649, 110
        %v754 = vpop.permute.xlu0 %753
        %755 = vrot.lane.b32.xlu0 %v651, 110
        %v756 = vpop.permute.xlu0 %755
        %757 = vrot.lane.b32.xlu0 %v653, 110
        %v758 = vpop.permute.xlu0 %757
        %759 = vrot.lane.b32.xlu0 %v655, 110
        %v760 = vpop.permute.xlu0 %759
        %761 = vrot.lane.b32.xlu0 %v650, 110
        %v762 = vpop.permute.xlu0 %761
        %763 = vrot.lane.b32.xlu0 %v652, 110
        %v764 = vpop.permute.xlu0 %763
        %765 = vrot.lane.b32.xlu0 %v654, 110
        %v766 = vpop.permute.xlu0 %765
        %767 = vrot.lane.b32.xlu0 %v656, 110
        %v768 = vpop.permute.xlu0 %767
        %v769 = vsel %vm338, %v754, %v762
        %v770 = vsel %vm338, %v756, %v764
        %v771 = vsel %vm338, %v758, %v766
        %v772 = vsel %vm338, %v760, %v768
        %v773 = vsel %vm338, %v762, %v754
        %v774 = vsel %vm338, %v764, %v756
        %v775 = vsel %vm338, %v766, %v758
        %v776 = vsel %vm338, %v768, %v760
        %777 = vrot.lane.b32.xlu0 %v649, 96
        %v778 = vpop.permute.xlu0 %777
        %779 = vrot.lane.b32.xlu0 %v651, 96
        %v780 = vpop.permute.xlu0 %779
        %781 = vrot.lane.b32.xlu0 %v653, 96
        %v782 = vpop.permute.xlu0 %781
        %783 = vrot.lane.b32.xlu0 %v655, 96
        %v784 = vpop.permute.xlu0 %783
        %785 = vrot.lane.b32.xlu0 %v650, 96
        %v786 = vpop.permute.xlu0 %785
        %787 = vrot.lane.b32.xlu0 %v652, 96
        %v788 = vpop.permute.xlu0 %787
        %789 = vrot.lane.b32.xlu0 %v654, 96
        %v790 = vpop.permute.xlu0 %789
        %791 = vrot.lane.b32.xlu0 %v656, 96
        %v792 = vpop.permute.xlu0 %791
        %v793 = vsel %vm363, %v778, %v786
        %v794 = vsel %vm363, %v780, %v788
        %v795 = vsel %vm363, %v782, %v790
        %v796 = vsel %vm363, %v784, %v792
        %v797 = vsel %vm363, %v786, %v778
        %v798 = vsel %vm363, %v788, %v780
        %v799 = vsel %vm363, %v790, %v782
        %v800 = vsel %vm363, %v792, %v784
        %801 = vrot.lane.b32.xlu0 %v649, 95
        %v802 = vpop.permute.xlu0 %801
        %803 = vrot.lane.b32.xlu0 %v651, 95
        %v804 = vpop.permute.xlu0 %803
        %805 = vrot.lane.b32.xlu0 %v653, 95
        %v806 = vpop.permute.xlu0 %805
        %807 = vrot.lane.b32.xlu0 %v655, 95
        %v808 = vpop.permute.xlu0 %807
        %809 = vrot.lane.b32.xlu0 %v650, 95
        %v810 = vpop.permute.xlu0 %809
        %811 = vrot.lane.b32.xlu0 %v652, 95
        %v812 = vpop.permute.xlu0 %811
        %813 = vrot.lane.b32.xlu0 %v654, 95
        %v814 = vpop.permute.xlu0 %813
        %815 = vrot.lane.b32.xlu0 %v656, 95
        %v816 = vpop.permute.xlu0 %815
        %v817 = vsel %vm388, %v802, %v810
        %v818 = vsel %vm388, %v804, %v812
        %v819 = vsel %vm388, %v806, %v814
        %v820 = vsel %vm388, %v808, %v816
        %v821 = vsel %vm388, %v810, %v802
        %v822 = vsel %vm388, %v812, %v804
        %v823 = vsel %vm388, %v814, %v806
        %v824 = vsel %vm388, %v816, %v808
        %825 = vrot.lane.b32.xlu0 %v649, 94
        %v826 = vpop.permute.xlu0 %825
        %827 = vrot.lane.b32.xlu0 %v651, 94
        %v828 = vpop.permute.xlu0 %827
        %829 = vrot.lane.b32.xlu0 %v653, 94
        %v830 = vpop.permute.xlu0 %829
        %831 = vrot.lane.b32.xlu0 %v655, 94
        %v832 = vpop.permute.xlu0 %831
        %833 = vrot.lane.b32.xlu0 %v650, 94
        %v834 = vpop.permute.xlu0 %833
        %835 = vrot.lane.b32.xlu0 %v652, 94
        %v836 = vpop.permute.xlu0 %835
        %837 = vrot.lane.b32.xlu0 %v654, 94
        %v838 = vpop.permute.xlu0 %837
        %839 = vrot.lane.b32.xlu0 %v656, 94
        %v840 = vpop.permute.xlu0 %839
        %v841 = vsel %vm413, %v826, %v834
        %v842 = vsel %vm413, %v828, %v836
        %v843 = vsel %vm413, %v830, %v838
        %v844 = vsel %vm413, %v832, %v840
        %v845 = vsel %vm413, %v834, %v826
        %v846 = vsel %vm413, %v836, %v828
        %v847 = vsel %vm413, %v838, %v830
        %v848 = vsel %vm413, %v840, %v832
        %s849 = scalar_lea.vmem [#allocation5], 96
        %v850 = vld [vmem:[%s849] sm:$0xff]
        %v851 = vld [vmem:[%s849 + $0x8] sm:$0xff]
        %v852 = vld [vmem:[%s849 + $0x10] sm:$0xff]
        %v853 = vld [vmem:[%s849 + $0x18] sm:$0xff]
        %v854 = vld [vmem:[%s849 + $0x20] sm:$0xff]
        %v855 = vld [vmem:[%s849 + $0x28] sm:$0xff]
        %v856 = vld [vmem:[%s849 + $0x30] sm:$0xff]
        %v857 = vld [vmem:[%s849 + $0x38] sm:$0xff]
        %v858 = vld [vmem:[%s849 + $0x40] sm:$0xff]
        %v859 = vld [vmem:[%s849 + $0x48] sm:$0xff]
        %v860 = vld [vmem:[%s849 + $0x50] sm:$0xff]
        %v861 = vld [vmem:[%s849 + $0x58] sm:$0xff]
        %s862 = scalar_lea.vmem %s2, 32
        %v863 = vld [vmem:[%s862] sm:$0xff]
        %v864 = vld [vmem:[%s862 + $0x8] sm:$0xff]
        %v865 = vld [vmem:[%s862 + $0x10] sm:$0xff]
        %v866 = vld [vmem:[%s862 + $0x18] sm:$0xff]
        %868 = vset.pattern.permute.xlu0 0
        %869 = vperm.xlu0 %868, %v863
        %v870 = vpop.permute.xlu0 %869
        %873 = vset.pattern.permute.xlu0 0
        %874 = vperm.xlu0 %873, %v864
        %v875 = vpop.permute.xlu0 %874
        %878 = vset.pattern.permute.xlu0 0
        %879 = vperm.xlu0 %878, %v865
        %v880 = vpop.permute.xlu0 %879
        %883 = vset.pattern.permute.xlu0 0
        %884 = vperm.xlu0 %883, %v866
        %v885 = vpop.permute.xlu0 %884
        %v888 = vsel %vm458, %v852, 0
        %v891 = vsel %vm458, %v855, 0
        %v894 = vsel %vm458, %v858, 0
        %v897 = vsel %vm458, %v861, 0
        %899 = vmatprep.subr.mxu0 %v650
        %900 = vmatpush1.msra.mxu0 %v649
        %901 = vmatprep.subr.mxu0 %v652
        %902 = vmatpush1.msra.mxu0 %v651
        %903 = vmatprep.subr.mxu0 %v654
        %904 = vmatpush1.msra.mxu0 %v653
        %905 = vmatprep.subr.mxu0 %v656
        %906 = vmatpush1.msra.mxu0 %v655
        %907 = vmatprep.subr.mxu0 %v677
        %908 = vmatpush1.msra.mxu0 %v673
        %909 = vmatprep.subr.mxu0 %v678
        %910 = vmatpush1.msra.mxu0 %v674
        %911 = vmatprep.subr.mxu0 %v679
        %912 = vmatpush1.msra.mxu0 %v675
        %913 = vmatprep.subr.mxu0 %v680
        %914 = vmatpush1.msra.mxu0 %v676
        %915 = vmatprep.subr.mxu0 %v701
        %916 = vmatpush1.msra.mxu0 %v697
        %917 = vmatprep.subr.mxu0 %v702
        %918 = vmatpush1.msra.mxu0 %v698
        %919 = vmatprep.subr.mxu0 %v703
        %920 = vmatpush1.msra.mxu0 %v699
        %921 = vmatprep.subr.mxu0 %v704
        %922 = vmatpush1.msra.mxu0 %v700
        %923 = vmatprep.subr.mxu0 %v725
        %924 = vmatpush1.msra.mxu0 %v721
        %925 = vmatprep.subr.mxu0 %v726
        %926 = vmatpush1.msra.mxu0 %v722
        %927 = vmatprep.subr.mxu0 %v727
        %928 = vmatpush1.msra.mxu0 %v723
        %929 = vmatprep.subr.mxu0 %v728
        %930 = vmatpush1.msra.mxu0 %v724
        %931 = vmatprep.subr.mxu0 %v749
        %932 = vmatpush1.msra.mxu0 %v745
        %933 = vmatprep.subr.mxu0 %v750
        %934 = vmatpush1.msra.mxu0 %v746
        %935 = vmatprep.subr.mxu0 %v751
        %936 = vmatpush1.msra.mxu0 %v747
        %937 = vmatprep.subr.mxu0 %v752
        %938 = vmatpush1.msra.mxu0 %v748
        %939 = vmatprep.subr.mxu0 %v773
        %940 = vmatpush1.msra.mxu0 %v769
        %941 = vmatprep.subr.mxu0 %v774
        %942 = vmatpush1.msra.mxu0 %v770
        %943 = vmatprep.subr.mxu0 %v775
        %944 = vmatpush1.msra.mxu0 %v771
        %945 = vmatprep.subr.mxu0 %v776
        %946 = vmatpush1.msra.mxu0 %v772
        %947 = vmatprep.subr.mxu0 %v797
        %948 = vmatpush1.msra.mxu0 %v793
        %949 = vmatprep.subr.mxu0 %v798
        %950 = vmatpush1.msra.mxu0 %v794
        %951 = vmatprep.subr.mxu0 %v799
        %952 = vmatpush1.msra.mxu0 %v795
        %953 = vmatprep.subr.mxu0 %v800
        %954 = vmatpush1.msra.mxu0 %v796
        %955 = vmatprep.subr.mxu0 %v821
        %956 = vmatpush1.msra.mxu0 %v817
        %957 = vmatprep.subr.mxu0 %v822
        %958 = vmatpush1.msra.mxu0 %v818
        %959 = vmatprep.subr.mxu0 %v823
        %960 = vmatpush1.msra.mxu0 %v819
        %961 = vmatprep.subr.mxu0 %v824
        %962 = vmatpush1.msra.mxu0 %v820
        %963 = vmatprep.mubr.f32.mxu0 %v851
        %964 = vmatmul.mubr.f32.gmra.mrb[0].mxu0 %v850
        %v965 = vpop.f32.mrb[0].mxu0
        %v966 = vadd.f32 %v870, %v965
        %v967 = vpop.f32.mrb[0].mxu0
        %v968 = vadd.f32 %v870, %v967
        %969 = vmatprep.mubr.f32.mxu0 %v854
        %970 = vmatmul.mubr.f32.gmra.mrb[0].mxu0 %v853
        %v971 = vpop.f32.mrb[0].mxu0
        %v972 = vadd.f32 %v875, %v971
        %v973 = vpop.f32.mrb[0].mxu0
        %v974 = vadd.f32 %v875, %v973
        %975 = vmatprep.mubr.f32.mxu0 %v857
        %976 = vmatmul.mubr.f32.gmra.mrb[0].mxu0 %v856
        %v977 = vpop.f32.mrb[0].mxu0
        %v978 = vadd.f32 %v880, %v977
        %v979 = vpop.f32.mrb[0].mxu0
        %v980 = vadd.f32 %v880, %v979
        %981 = vmatprep.mubr.f32.mxu0 %v860
        %982 = vmatmul.mubr.f32.gmra.mrb[0].mxu0 %v859
        %v983 = vpop.f32.mrb[0].mxu0
        %v984 = vadd.f32 %v885, %v983
        %v985 = vpop.f32.mrb[0].mxu0
        %v986 = vadd.f32 %v885, %v985
        %987 = vdwg.mxu0
        %988 = vmatprep.subr.mxu0 %v845
        %989 = vmatpush1.msra.mxu0 %v841
        %990 = vmatprep.subr.mxu0 %v846
        %991 = vmatpush1.msra.mxu0 %v842
        %992 = vmatprep.subr.mxu0 %v847
        %993 = vmatpush1.msra.mxu0 %v843
        %994 = vmatprep.subr.mxu0 %v848
        %995 = vmatpush1.msra.mxu0 %v844
        %996 = vmatprep.subr.mxu0 0.0
        %997 = vmatpush1.msra.mxu0 0.0
        %998 = vmatprep.subr.mxu0 0.0
        %999 = vmatpush1.msra.mxu0 0.0
        %1000 = vmatprep.subr.mxu0 0.0
        %1001 = vmatpush1.msra.mxu0 0.0
        %1002 = vmatprep.subr.mxu0 0.0
        %1003 = vmatpush1.msra.mxu0 0.0
        %1004 = vmatprep.subr.mxu0 0.0
        %1005 = vmatpush1.msra.mxu0 0.0
        %1006 = vmatprep.subr.mxu0 0.0
        %1007 = vmatpush1.msra.mxu0 0.0
        %1008 = vmatprep.subr.mxu0 0.0
        %1009 = vmatpush1.msra.mxu0 0.0
        %1010 = vmatprep.subr.mxu0 0.0
        %1011 = vmatpush1.msra.mxu0 0.0
        %1012 = vmatprep.subr.mxu0 0.0
        %1013 = vmatpush1.msra.mxu0 0.0
        %1014 = vmatprep.subr.mxu0 0.0
        %1015 = vmatpush1.msra.mxu0 0.0
        %1016 = vmatprep.subr.mxu0 0.0
        %1017 = vmatpush1.msra.mxu0 0.0
        %1018 = vmatprep.subr.mxu0 0.0
        %1019 = vmatpush1.msra.mxu0 0.0
        %1020 = vmatprep.subr.mxu0 0.0
        %1021 = vmatpush1.msra.mxu0 0.0
        %1022 = vmatprep.subr.mxu0 0.0
        %1023 = vmatpush1.msra.mxu0 0.0
        %1024 = vmatprep.subr.mxu0 0.0
        %1025 = vmatpush1.msra.mxu0 0.0
        %1026 = vmatprep.subr.mxu0 0.0
        %1027 = vmatpush1.msra.mxu0 0.0
        %1028 = vmatprep.subr.mxu0 0.0
        %1029 = vmatpush1.msra.mxu0 0.0
        %1030 = vmatprep.subr.mxu0 0.0
        %1031 = vmatpush1.msra.mxu0 0.0
        %1032 = vmatprep.subr.mxu0 0.0
        %1033 = vmatpush1.msra.mxu0 0.0
        %1034 = vmatprep.subr.mxu0 0.0
        %1035 = vmatpush1.msra.mxu0 0.0
        %1036 = vmatprep.subr.mxu0 0.0
        %1037 = vmatpush1.msra.mxu0 0.0
        %1038 = vmatprep.subr.mxu0 0.0
        %1039 = vmatpush1.msra.mxu0 0.0
        %1040 = vmatprep.subr.mxu0 0.0
        %1041 = vmatpush1.msra.mxu0 0.0
        %1042 = vmatprep.subr.mxu0 0.0
        %1043 = vmatpush1.msra.mxu0 0.0
        %1044 = vmatprep.subr.mxu0 0.0
        %1045 = vmatpush1.msra.mxu0 0.0
        %1046 = vmatprep.subr.mxu0 0.0
        %1047 = vmatpush1.msra.mxu0 0.0
        %1048 = vmatprep.subr.mxu0 0.0
        %1049 = vmatpush1.msra.mxu0 0.0
        %1050 = vmatprep.subr.mxu0 0.0
        %1051 = vmatpush1.msra.mxu0 0.0
        %1052 = vmatprep.mubr.f32.mxu0 0.0
        %1053 = vmatmul.mubr.f32.gmra.mrb[0].mxu0 %v888
        %v1054 = vpop.f32.mrb[0].mxu0
        %v1055 = vadd.f32 %v966, %v1054
        %v1056 = vpop.f32.mrb[0].mxu0
        %v1057 = vadd.f32 %v968, %v1056
        %1058 = vmatprep.mubr.f32.mxu0 0.0
        %1059 = vmatmul.mubr.f32.gmra.mrb[0].mxu0 %v891
        %v1060 = vpop.f32.mrb[0].mxu0
        %v1061 = vadd.f32 %v972, %v1060
        %v1062 = vpop.f32.mrb[0].mxu0
        %v1063 = vadd.f32 %v974, %v1062
        %1064 = vmatprep.mubr.f32.mxu0 0.0
        %1065 = vmatmul.mubr.f32.gmra.mrb[0].mxu0 %v894
        %v1066 = vpop.f32.mrb[0].mxu0
        %v1067 = vadd.f32 %v978, %v1066
        %v1068 = vpop.f32.mrb[0].mxu0
        %v1069 = vadd.f32 %v980, %v1068
        %1070 = vmatprep.mubr.f32.mxu0 0.0
        %1071 = vmatmul.mubr.f32.gmra.mrb[0].mxu0 %v897
        %v1072 = vpop.f32.mrb[0].mxu0
        %v1073 = vadd.f32 %v984, %v1072
        %v1074 = vpop.f32.mrb[0].mxu0
        %v1075 = vadd.f32 %v986, %v1074
        %1076 = vdwg.mxu0
        %1081 = vrot.lane.b32.xlu0 %v1055, 124
        %v1082 = vpop.permute.xlu0 %1081
        %1083 = vrot.lane.b32.xlu0 %v1061, 124
        %v1084 = vpop.permute.xlu0 %1083
        %1085 = vrot.lane.b32.xlu0 %v1067, 124
        %v1086 = vpop.permute.xlu0 %1085
        %1087 = vrot.lane.b32.xlu0 %v1073, 124
        %v1088 = vpop.permute.xlu0 %1087
        %1093 = vrot.lane.b32.xlu0 %v1055, 120
        %v1094 = vpop.permute.xlu0 %1093
        %1095 = vrot.lane.b32.xlu0 %v1061, 120
        %v1096 = vpop.permute.xlu0 %1095
        %1097 = vrot.lane.b32.xlu0 %v1067, 120
        %v1098 = vpop.permute.xlu0 %1097
        %1099 = vrot.lane.b32.xlu0 %v1073, 120
        %v1100 = vpop.permute.xlu0 %1099
        %1105 = vrot.lane.b32.xlu0 %v1055, 116
        %v1106 = vpop.permute.xlu0 %1105
        %1107 = vrot.lane.b32.xlu0 %v1061, 116
        %v1108 = vpop.permute.xlu0 %1107
        %1109 = vrot.lane.b32.xlu0 %v1067, 116
        %v1110 = vpop.permute.xlu0 %1109
        %1111 = vrot.lane.b32.xlu0 %v1073, 116
        %v1112 = vpop.permute.xlu0 %1111
        %1117 = vrot.lane.b32.xlu0 %v1055, 112
        %v1118 = vpop.permute.xlu0 %1117
        %1119 = vrot.lane.b32.xlu0 %v1061, 112
        %v1120 = vpop.permute.xlu0 %1119
        %1121 = vrot.lane.b32.xlu0 %v1067, 112
        %v1122 = vpop.permute.xlu0 %1121
        %1123 = vrot.lane.b32.xlu0 %v1073, 112
        %v1124 = vpop.permute.xlu0 %1123
        %1129 = vrot.lane.b32.xlu0 %v1055, 108
        %v1130 = vpop.permute.xlu0 %1129
        %1131 = vrot.lane.b32.xlu0 %v1061, 108
        %v1132 = vpop.permute.xlu0 %1131
        %1133 = vrot.lane.b32.xlu0 %v1067, 108
        %v1134 = vpop.permute.xlu0 %1133
        %1135 = vrot.lane.b32.xlu0 %v1073, 108
        %v1136 = vpop.permute.xlu0 %1135
        %1141 = vrot.lane.b32.xlu0 %v1055, 104
        %v1142 = vpop.permute.xlu0 %1141
        %1143 = vrot.lane.b32.xlu0 %v1061, 104
        %v1144 = vpop.permute.xlu0 %1143
        %1145 = vrot.lane.b32.xlu0 %v1067, 104
        %v1146 = vpop.permute.xlu0 %1145
        %1147 = vrot.lane.b32.xlu0 %v1073, 104
        %v1148 = vpop.permute.xlu0 %1147
        %1153 = vrot.lane.b32.xlu0 %v1055, 100
        %v1154 = vpop.permute.xlu0 %1153
        %1155 = vrot.lane.b32.xlu0 %v1061, 100
        %v1156 = vpop.permute.xlu0 %1155
        %1157 = vrot.lane.b32.xlu0 %v1067, 100
        %v1158 = vpop.permute.xlu0 %1157
        %1159 = vrot.lane.b32.xlu0 %v1073, 100
        %v1160 = vpop.permute.xlu0 %1159
        %1169 = vrot.lane.b32.xlu0 %v1057, 96
        %v1170 = vpop.permute.xlu0 %1169
        %1171 = vrot.lane.b32.xlu0 %v1063, 96
        %v1172 = vpop.permute.xlu0 %1171
        %1173 = vrot.lane.b32.xlu0 %v1069, 96
        %v1174 = vpop.permute.xlu0 %1173
        %1175 = vrot.lane.b32.xlu0 %v1075, 96
        %v1176 = vpop.permute.xlu0 %1175
        %1181 = vrot.lane.b32.xlu0 %v1057, 92
        %v1182 = vpop.permute.xlu0 %1181
        %1183 = vrot.lane.b32.xlu0 %v1063, 92
        %v1184 = vpop.permute.xlu0 %1183
        %1185 = vrot.lane.b32.xlu0 %v1069, 92
        %v1186 = vpop.permute.xlu0 %1185
        %1187 = vrot.lane.b32.xlu0 %v1075, 92
        %v1188 = vpop.permute.xlu0 %1187
        %1193 = vrot.lane.b32.xlu0 %v1057, 88
        %v1194 = vpop.permute.xlu0 %1193
        %1195 = vrot.lane.b32.xlu0 %v1063, 88
        %v1196 = vpop.permute.xlu0 %1195
        %1197 = vrot.lane.b32.xlu0 %v1069, 88
        %v1198 = vpop.permute.xlu0 %1197
        %1199 = vrot.lane.b32.xlu0 %v1075, 88
        %v1200 = vpop.permute.xlu0 %1199
        %1205 = vrot.lane.b32.xlu0 %v1057, 84
        %v1206 = vpop.permute.xlu0 %1205
        %1207 = vrot.lane.b32.xlu0 %v1063, 84
        %v1208 = vpop.permute.xlu0 %1207
        %1209 = vrot.lane.b32.xlu0 %v1069, 84
        %v1210 = vpop.permute.xlu0 %1209
        %1211 = vrot.lane.b32.xlu0 %v1075, 84
        %v1212 = vpop.permute.xlu0 %1211
        %vm1217 = vcmask 97280
        %v1218 = vsel %vm1217, %v1055, %v1082
        %v1219 = vsel %vm1217, %v1061, %v1084
        %v1220 = vsel %vm1217, %v1067, %v1086
        %v1221 = vsel %vm1217, %v1073, %v1088
        %vm1222 = vcmask 195584
        %v1223 = vsel %vm1222, %v1218, %v1094
        %v1224 = vsel %vm1222, %v1219, %v1096
        %v1225 = vsel %vm1222, %v1220, %v1098
        %v1226 = vsel %vm1222, %v1221, %v1100
        %vm1227 = vcmask 293888
        %v1228 = vsel %vm1227, %v1223, %v1106
        %v1229 = vsel %vm1227, %v1224, %v1108
        %v1230 = vsel %vm1227, %v1225, %v1110
        %v1231 = vsel %vm1227, %v1226, %v1112
        %vm1232 = vcmask 392192
        %v1233 = vsel %vm1232, %v1228, %v1118
        %v1234 = vsel %vm1232, %v1229, %v1120
        %v1235 = vsel %vm1232, %v1230, %v1122
        %v1236 = vsel %vm1232, %v1231, %v1124
        %vm1237 = vcmask 490496
        %v1238 = vsel %vm1237, %v1233, %v1130
        %v1239 = vsel %vm1237, %v1234, %v1132
        %v1240 = vsel %vm1237, %v1235, %v1134
        %v1241 = vsel %vm1237, %v1236, %v1136
        %vm1242 = vcmask 588800
        %v1243 = vsel %vm1242, %v1238, %v1142
        %v1244 = vsel %vm1242, %v1239, %v1144
        %v1245 = vsel %vm1242, %v1240, %v1146
        %v1246 = vsel %vm1242, %v1241, %v1148
        %vm1247 = vcmask 687104
        %v1248 = vsel %vm1247, %v1243, %v1154
        %v1249 = vsel %vm1247, %v1244, %v1156
        %v1250 = vsel %vm1247, %v1245, %v1158
        %v1251 = vsel %vm1247, %v1246, %v1160
        %vm1252 = vcmask 785408
        %v1253 = vsel %vm1252, %v1248, %v1170
        %v1254 = vsel %vm1252, %v1249, %v1172
        %v1255 = vsel %vm1252, %v1250, %v1174
        %v1256 = vsel %vm1252, %v1251, %v1176
        %vm1257 = vcmask 883712
        %v1258 = vsel %vm1257, %v1253, %v1182
        %v1259 = vsel %vm1257, %v1254, %v1184
        %v1260 = vsel %vm1257, %v1255, %v1186
        %v1261 = vsel %vm1257, %v1256, %v1188
        %vm1262 = vcmask 982016
        %v1263 = vsel %vm1262, %v1258, %v1194
        %v1264 = vsel %vm1262, %v1259, %v1196
        %v1265 = vsel %vm1262, %v1260, %v1198
        %v1266 = vsel %vm1262, %v1261, %v1200
        %vm1267 = vcmask 31744
        %v1268 = vsel %vm1267, %v1194, %v1206
        %v1269 = vsel %vm1267, %v1196, %v1208
        %v1270 = vsel %vm1267, %v1198, %v1210
        %v1271 = vsel %vm1267, %v1200, %v1212
        %1272 = vst [vmem:[%s203] sm:$0xff] %v1263
        %vm1273 = vcmask 130048
        %1274 = vst.msk [vmem:[%s203 + $0x8] sm:$0xff] %vm1273, %v1268
        %1275 = vst [vmem:[%s203 + $0x10] sm:$0xff] %v1264
        %1276 = vst.msk [vmem:[%s203 + $0x18] sm:$0xff] %vm1273, %v1269
        %1277 = vst [vmem:[%s203 + $0x20] sm:$0xff] %v1265
        %1278 = vst.msk [vmem:[%s203 + $0x28] sm:$0xff] %vm1273, %v1270
        %1279 = vst [vmem:[%s203 + $0x30] sm:$0xff] %v1266
        %1280 = vst.msk [vmem:[%s203 + $0x38] sm:$0xff] %vm1273, %v1271
        %s1281 = sand.u32 %s97, 1
        %s1282 = scalar_lea.sflag [#allocation4], %s1281
        %s1283 = sand.u32 %s97, 1
        %s1284 = smul.addr %s1283, 64
        %s1285 = scalar_lea.vmem [#allocation7], %s1284
        // Predicated region
        $region41: #{tpu_custom_call.1} parent=31 // pred_check
          %p1286 = pneg %p107
        $region42: #{tpu_custom_call.1} parent=31 // pred_check_branch
          %1288 = sbr.rel (%p1286) target = $region44
        $region43: #{tpu_custom_call.1} parent=31 // pred_region
          %s1290 = ssub.s32 1024, 1024
          %1291 = vsyncadd %s1282, %s1290
          %s1292 = smul.addr %s21, 8
          %s1293 = smul.addr %s1292, 128
          %s1294 = scalar_lea.hbm %s3, %s1293
          %s1295 = sshll.u32 %s1285, 4
          %s1296 = int_to_ptr.vmem [resolvable:$true] %s1295
          %1301 = dma.vmem_to_hbm [thread:$0]  %s1296, 1024, %s1294, %s1282, 256, 256, 16
        $region44: #{tpu_custom_call.1} parent=31 // pred_fallthru
          _
      $region32: #{tpu_custom_call.1} parent=5 // pred_fallthru
        _
      %p1302 = scmp.le.s32.totalorder 2, %s16
      // Predicated region
      $region45: #{tpu_custom_call.1} parent=5 // pred_check
        %p1303 = pneg %p1302
      $region46: #{tpu_custom_call.1} parent=5 // pred_check_branch
        %1305 = sbr.rel (%p1303) target = $region48
      $region47: #{tpu_custom_call.1} parent=5 // pred_region
        %s1306 = ssub.s32 %s16, 2
        // Predicated region
        $region49: #{tpu_custom_call.1} parent=47 // pred_check
          %p1307 = pneg %p113
        $region50: #{tpu_custom_call.1} parent=47 // pred_check_branch
          %1309 = sbr.rel (%p1307) target = $region52
        $region51: #{tpu_custom_call.1} parent=47 // pred_region
          %s1310 = sand.u32 %s98, 1
          %s1311 = scalar_lea.sflag [#allocation4], %s1310
          %s1312 = sand.u32 %s98, 1
          %s1313 = smul.addr %s1312, 64
          %s1314 = scalar_lea.vmem [#allocation7], %s1313
          %1315 = dma.done %s1311, 1024
        $region52: #{tpu_custom_call.1} parent=47 // pred_fallthru
          _
      $region48: #{tpu_custom_call.1} parent=5 // pred_fallthru
        _
    $region6: #{tpu_custom_call.1} parent=1 // loop_footer
      %s20 = sadd.s32 1, %s16
    $region7: #{tpu_custom_call.1} parent=1 // loop_footer_branch
      %15 = sbr.rel target = $region3
    $region8: #{tpu_custom_call.1} parent=1 // loop_exit
      _
    %1316 = vsyncpa [#allocation3], 1
    %s1317 = scalar_lea.sflag [#allocation3], 1
    %1318 = vsyncpa %s1317, 1
    %1319 = vsyncpa [#allocation6], 1
    %1320 = vsyncpa [#allocation4], 1
    %s1321 = scalar_lea.sflag [#allocation4], 1
    %1322 = vsyncpa %s1321, 1

</llo_original>
